<compile_context>
chip_gen: v7x
topology: tpu7x:2x2x1
jax: 0.10.0
libtpu: 0.0.40
codegen_flags: <defaults>
</compile_context>

<pallas_src>
import jax
import jax.numpy as jnp
from jax.experimental import pallas as pl
from jax.experimental.pallas import tpu as pltpu

P_DROP = 0.96
KEEP = 1.0 - P_DROP                         # 0.04 per-dropout keep probability
SCALE2 = (1.0 / KEEP) ** 2                  # 25 * 25 = 625 combined survivor scale
KEEP_BOTH = KEEP * KEEP                     # 0.0016 = P(survive both dropouts)
KEEP_THRESH = int(round(KEEP_BOTH * (1 << 32)))   # integer threshold on raw uint32 bits
INV_2_24 = 1.0 / (1 << 24)


def dropout_rand_kernel(u6_bits_ref, mask_bits_ref, o_ref):
    # x6 = rand_like(x): top 24 bits of the raw draw -> uniform [0, 1)
    u6 = (u6_bits_ref[...] >> jnp.uint32(8)).astype(jnp.float32) * jnp.float32(INV_2_24)
    # dropout(p=.96) applied twice == keep with prob 0.04^2, scale survivors by 625.
    # Integer compare on raw bits: no float conversion needed for the mask.
    keep = mask_bits_ref[...] < jnp.uint32(KEEP_THRESH)
    o_ref[...] = jnp.where(keep, u6 * jnp.float32(SCALE2), jnp.float32(0.0)).astype(o_ref.dtype)


def model_forward(x, key):
    """Forward pass of Model: returns x7 (same shape/dtype as x)."""
    # Randomness is drawn host-side (key-based) and consumed in-kernel; the dead
    # intermediates x2/x3/x4/x5 never influence the returned value and are skipped.
    k_u6, k_mask = jax.random.split(key)
    u6_bits = jax.random.bits(k_u6, x.shape, dtype=jnp.uint32)
    mask_bits = jax.random.bits(k_mask, x.shape, dtype=jnp.uint32)
    return pl.pallas_call(
        dropout_rand_kernel,
        out_shape=jax.ShapeDtypeStruct(x.shape, x.dtype),
        in_specs=[
            pl.BlockSpec(memory_space=pltpu.MemorySpace.VMEM),  # raw bits for x6
            pl.BlockSpec(memory_space=pltpu.MemorySpace.VMEM),  # raw bits for fused mask
        ],
        out_specs=pl.BlockSpec(memory_space=pltpu.MemorySpace.VMEM),
    )(u6_bits, mask_bits)
    # TODO(synk): if this ever scales beyond (8, 6), tile with a lane-dense (multiple-of-128
    # last dim) grid and cap block size for v7x's 64 MiB VMEM.


if __name__ == "__main__":
    key = jax.random.PRNGKey(0)
    kx, kr = jax.random.split(key)
    # Same shape as the PyTorch script: x = torch.randn(8, 6)
    x = jax.random.normal(kx, (8, 6), dtype=jnp.float32)

    out = model_forward(x, kr)
    out = jax.block_until_ready(out)

    assert out.shape == (8, 6) and out.dtype == jnp.float32
    # Non-zero entries must equal uniform * 625 (in [0, 625)); zeros elsewhere
    # (keep probability 0.04^2 = 0.0016, so almost all entries are zero).
    nz = out[out != 0.0]
    assert bool(jnp.all(nz >= 0.0)) and bool(jnp.all(nz < 625.0))
    print("KERNEL_OK")
</pallas_src>

<mosaic_0001>
module attributes {stable_mosaic.version = 11 : i64} {
  func.func @dropout_rand_kernel(%arg0: memref<8x6xi32, #tpu.memory_space<vmem>>, %arg1: memref<8x6xi32, #tpu.memory_space<vmem>>, %arg2: memref<8x6xf32, #tpu.memory_space<vmem>>) attributes {dimension_semantics = [], scalar_prefetch = 0 : i64, scratch_operands = 0 : i64, tpu.core_type = #tpu.core_type<tc>} {
    %c0 = arith.constant 0 : index
    %c0_0 = arith.constant 0 : index
    %0 = vector.load %arg0[%c0, %c0_0] : memref<8x6xi32, #tpu.memory_space<vmem>>, vector<8x6xi32>
    %c8_i32 = arith.constant 8 : i32
    %1 = vector.broadcast %c8_i32 : i32 to vector<8x6xi32>
    %2 = arith.shrui %0, %1 : vector<8x6xi32>
    %3 = arith.uitofp %2 : vector<8x6xi32> to vector<8x6xf32>
    %cst = arith.constant 5.96046448E-8 : f32
    %4 = vector.broadcast %cst : f32 to vector<8x6xf32>
    %5 = arith.mulf %3, %4 : vector<8x6xf32>
    %c0_1 = arith.constant 0 : index
    %c0_2 = arith.constant 0 : index
    %6 = vector.load %arg1[%c0_1, %c0_2] : memref<8x6xi32, #tpu.memory_space<vmem>>, vector<8x6xi32>
    %c6871948_i32 = arith.constant 6871948 : i32
    %7 = vector.broadcast %c6871948_i32 : i32 to vector<8x6xi32>
    %8 = arith.cmpi ult, %6, %7 : vector<8x6xi32>
    %cst_3 = arith.constant 6.250000e+02 : f32
    %9 = vector.broadcast %cst_3 : f32 to vector<8x6xf32>
    %10 = arith.mulf %5, %9 : vector<8x6xf32>
    %cst_4 = arith.constant 0.000000e+00 : f32
    %11 = vector.broadcast %cst_4 : f32 to vector<8x6xf32>
    %12 = arith.select %8, %10, %11 : vector<8x6xi1>, vector<8x6xf32>
    %c0_5 = arith.constant 0 : index
    %c0_6 = arith.constant 0 : index
    %13 = vector.load %arg2[%c0_5, %c0_6] : memref<8x6xf32, #tpu.memory_space<vmem>>, vector<8x6xf32>
    tpu.vector_store %arg2[%c0_5, %c0_6], %12 {strides = array<i32>} : memref<8x6xf32, #tpu.memory_space<vmem>>, vector<8x6xf32>,
    return
  }
}

</mosaic_0001>

<llo_original>
// kernel: tpu_custom_call.1
$region0: #{tpu_custom_call.1}
  #allocation0 [shape = 'u32[]', space=smem, size = 0x4, offset = 0x4, fixed_abs, tag = 'smem constant byte address 0x4 - core index']
  #allocation1 [shape = 'u32[144,128]{1,0:T(1,128)}', space=vmem, size = 0x12000, scoped, tag = 'internal scratch']
  %s0 = inlined_call_operand.hbm [shape: u32[8,6], index: 0, kind: input, shape index: {}]
  %s1 = inlined_call_operand.hbm [shape: u32[8,6], index: 1, kind: input, shape index: {}]
  %s2 = inlined_call_operand.hbm [shape: f32[8,6], index: 2, kind: output, shape index: {}]
  %s3 = sld [smem:[#allocation0]]
  $region26: #{tpu_custom_call.1} parent=0
    _
  %s5 = ssub.s32 1, %s3
  %s6 = scalar_select 0, %s5, %s3
  $region1: #{tpu_custom_call.1} parent=0
    #allocation2 [shape = 'u8[4096]{0}', space=vmem, size = 0x1000, scoped, tag = 'input window, operand 0, single buffered']
    #allocation3 [shape = 's32[1]{0}', space=sflag, size = 0x4, scoped, tag = 'scoped memory for tpu_custom_call.1']
    #allocation4 [shape = 's32[1]{0}', space=sflag, size = 0x4, scoped, tag = 'scoped memory for tpu_custom_call.1']
    #allocation5 [shape = 'u8[4096]{0}', space=vmem, size = 0x1000, scoped, tag = 'input window, operand 1, single buffered']
    #allocation6 [shape = 's32[1]{0}', space=sflag, size = 0x4, scoped, tag = 'scoped memory for tpu_custom_call.1']
    #allocation7 [shape = 'u8[4096]{0}', space=vmem, size = 0x1000, scoped, tag = 'output window, operand 0, single buffered']
    %7 = vsyncpa [#allocation3], 0
    %8 = vsyncpa [#allocation6], 0
    %9 = vsyncpa [#allocation4], 0
    // Predicated region
    $region2: #{tpu_custom_call.1} parent=1 // pred_check
      _
    $region3: #{tpu_custom_call.1} parent=1 // pred_check_branch
      %11 = sbr.rel (0) target = $region5
    $region4: #{tpu_custom_call.1} parent=1 // pred_region
      %s13 = ssub.s32 128, 128
      %14 = vsyncadd [#allocation3], %s13
      %s16 = sshll.u32 [#allocation2], 4
      %s17 = int_to_ptr.vmem [resolvable:$true] %s16
      %19 = dma.hbm_to_vmem [thread:$0]  %s0, 128, %s17, [#allocation3]
    $region5: #{tpu_custom_call.1} parent=1 // pred_fallthru
      _
    // Predicated region
    $region6: #{tpu_custom_call.1} parent=1 // pred_check
      _
    $region7: #{tpu_custom_call.1} parent=1 // pred_check_branch
      %21 = sbr.rel (0) target = $region9
    $region8: #{tpu_custom_call.1} parent=1 // pred_region
      %s23 = ssub.s32 128, 128
      %24 = vsyncadd [#allocation6], %s23
      %s26 = sshll.u32 [#allocation5], 4
      %s27 = int_to_ptr.vmem [resolvable:$true] %s26
      %29 = dma.hbm_to_vmem [thread:$0]  %s1, 128, %s27, [#allocation6]
    $region9: #{tpu_custom_call.1} parent=1 // pred_fallthru
      _
    // Predicated region
    $region10: #{tpu_custom_call.1} parent=1 // pred_check
      _
    $region11: #{tpu_custom_call.1} parent=1 // pred_check_branch
      %31 = sbr.rel (0) target = $region13
    $region12: #{tpu_custom_call.1} parent=1 // pred_region
      %32 = dma.done [#allocation3], 128
    $region13: #{tpu_custom_call.1} parent=1 // pred_fallthru
      _
    // Predicated region
    $region14: #{tpu_custom_call.1} parent=1 // pred_check
      _
    $region15: #{tpu_custom_call.1} parent=1 // pred_check_branch
      %34 = sbr.rel (0) target = $region17
    $region16: #{tpu_custom_call.1} parent=1 // pred_region
      %35 = dma.done [#allocation6], 128
    $region17: #{tpu_custom_call.1} parent=1 // pred_fallthru
      _
    %v36 = vld [vmem:[#allocation2] sm:$0xff]
    %v37 = vshrl.u32 %v36, 8
    %v38 = vshrl.u32 %v37, 16
    %v39 = vand.u32 %v37, 65535
    %v40 = vcvt.s32.f32 %v38
    %v41 = vmul.f32 %v40, 65536.0
    %v42 = vcvt.s32.f32 %v39
    %v43 = vadd.f32 %v41, %v42
    %v44 = vmul.f32 %v43, 5.9604645e-08
    %v45 = vld [vmem:[#allocation5] sm:$0xff]
    %vm46 = vcmp.lt.u32.totalorder %v45, 6871948
    %v47 = vmul.f32 %v44, 625.0
    %v48 = vsel %vm46, %v47, 0.0
    %vm49 = vcmask 48128
    %50 = vst.msk [vmem:[#allocation7] sm:$0xff] %vm49, %v48
    // Predicated region
    $region18: #{tpu_custom_call.1} parent=1 // pred_check
      _
    $region19: #{tpu_custom_call.1} parent=1 // pred_check_branch
      %52 = sbr.rel (0) target = $region21
    $region20: #{tpu_custom_call.1} parent=1 // pred_region
      %s54 = ssub.s32 128, 128
      %55 = vsyncadd [#allocation4], %s54
      %s57 = sshll.u32 [#allocation7], 4
      %s58 = int_to_ptr.vmem [resolvable:$true] %s57
      %60 = dma.vmem_to_hbm [thread:$0]  %s58, 128, %s2, [#allocation4]
    $region21: #{tpu_custom_call.1} parent=1 // pred_fallthru
      _
    // Predicated region
    $region22: #{tpu_custom_call.1} parent=1 // pred_check
      _
    $region23: #{tpu_custom_call.1} parent=1 // pred_check_branch
      %62 = sbr.rel (0) target = $region25
    $region24: #{tpu_custom_call.1} parent=1 // pred_region
      %63 = dma.done [#allocation4], 128
    $region25: #{tpu_custom_call.1} parent=1 // pred_fallthru
      _
    %64 = vsyncpa [#allocation3], 1
    %65 = vsyncpa [#allocation6], 1
    %66 = vsyncpa [#allocation4], 1

</llo_original>
